<compile_context>
chip_gen: v7x
topology: tpu7x:2x2x1
jax: 0.10.0
libtpu: 0.0.40
codegen_flags: <defaults>
</compile_context>

<pallas_src>
import jax
import jax.numpy as jnp
from jax.experimental import pallas as pl
from jax.experimental.pallas import tpu as pltpu


# --------------------------------------------------------------------------
# tiling helpers
# --------------------------------------------------------------------------

def _round_up(x, m):
    return (x + m - 1) // m * m


def _pick_block(size, unit, max_units, max_waste=0.10):
    """Largest block (multiple of `unit`, <= max_units*unit) whose padding
    overhead on `size` stays under `max_waste`.  Returns (block, padded)."""
    n = max(-(-size // unit), 1)
    if n <= max_units:
        return n * unit, n * unit          # single block, no tiling on this axis
    for b in range(max_units, 0, -1):
        n_p = _round_up(n, b)
        if n_p - n <= n * max_waste:
            return b * unit, n_p * unit
    return unit, n * unit


def _tile_plan(rows, cols, *, min_itemsize=4, max_block_bytes=1 << 20):
    """Padded shapes + block sizes.  cols (H*W) is made lane-dense (multiple
    of 128, up to 1024 lanes per block); rows (B*C) are padded to the sublane
    granularity of the narrowest dtype and tiled so one f32 block <= 1 MiB."""
    sublane = 8 * max(1, 4 // int(min_itemsize))       # 8 (f32), 16 (bf16), 32 (i8)
    lane = 128
    col_blk, cols_p = _pick_block(cols, lane, 1024 // lane)
    max_row_units = max(1, (max_block_bytes // (col_blk * 4)) // sublane)
    row_blk, rows_p = _pick_block(rows, sublane, max_row_units)
    return rows_p, cols_p, row_blk, col_blk


def _pad2(x, rows_p, cols_p):
    r, c = x.shape
    if r == rows_p and c == cols_p:
        return x
    return jnp.pad(x, ((0, rows_p - r), (0, cols_p - c)))


def _pad3(x, rows_p, cols_p):
    _, r, c = x.shape
    if r == rows_p and c == cols_p:
        return x
    return jnp.pad(x, ((0, 0), (0, rows_p - r), (0, cols_p - c)))


def _param_rows(param, B, C, rows, rows_p, dtype):
    """(C,1,1) per-channel parameter -> (rows_p, 1) per-row column vector."""
    col = jnp.broadcast_to(param.reshape(1, C), (B, C)).reshape(rows, 1).astype(dtype)
    if rows_p != rows:
        col = jnp.pad(col, ((0, rows_p - rows), (0, 0)))
    return col


# --------------------------------------------------------------------------
# single-timestep kernels
# --------------------------------------------------------------------------

def _lif_step_kernel(inp_ref, v_ref, z_ref, leak_ref, thresh_ref,
                     new_v_ref, new_z_ref):
    leak = leak_ref[...]                    # (row_blk, 1), broadcast over lanes
    thresh = thresh_ref[...]
    new_v = v_ref[...] * leak * (1.0 - z_ref[...]) + inp_ref[...]
    new_v_ref[...] = new_v
    new_z_ref[...] = jnp.where(new_v - thresh > 0.0, 1.0, 0.0).astype(new_z_ref.dtype)


def _lif_step_zero_state_kernel(inp_ref, thresh_ref, new_v_ref, new_z_ref):
    # prev_v = prev_z = 0  ->  new_v = inp; leak is not needed at all.
    inp = inp_ref[...]
    new_v_ref[...] = inp
    new_z_ref[...] = jnp.where(inp - thresh_ref[...] > 0.0, 1.0, 0.0
                               ).astype(new_z_ref.dtype)


def lif_forward(inp, leak_proxy, thresh, prev_v=None, prev_z=None, z_dtype=None):
    """One LIF timestep.  inp: (B,C,H,W); leak_proxy/thresh: (C,1,1)."""
    B, C, H, W = inp.shape
    dtype = inp.dtype
    z_dtype = dtype if z_dtype is None else jnp.dtype(z_dtype)
    rows, cols = B * C, H * W
    min_item = min(jnp.dtype(dtype).itemsize, jnp.dtype(z_dtype).itemsize)
    rows_p, cols_p, row_blk, col_blk = _tile_plan(rows, cols, min_itemsize=min_item)
    grid = (rows_p // row_blk, cols_p // col_blk)

    data_spec = pl.BlockSpec((row_blk, col_blk), lambda i, j: (i, j))
    param_spec = pl.BlockSpec((row_blk, 1), lambda i, j: (i, 0))
    out_shape = (jax.ShapeDtypeStruct((rows_p, cols_p), dtype),
                 jax.ShapeDtypeStruct((rows_p, cols_p), z_dtype))
    cparams = pltpu.CompilerParams(dimension_semantics=("parallel", "parallel"))

    # Parameter transforms done once on the tiny C-length vectors.
    thresh_rows = _param_rows(jnp.maximum(thresh, 0.01), B, C, rows, rows_p, dtype)
    inp2 = _pad2(inp.reshape(rows, cols), rows_p, cols_p)

    if prev_v is None or prev_z is None:
        new_v2, new_z2 = pl.pallas_call(
            _lif_step_zero_state_kernel,
            out_shape=out_shape,
            grid_spec=pltpu.PrefetchScalarGridSpec(
                num_scalar_prefetch=0, grid=grid,
                in_specs=[data_spec, param_spec],
                out_specs=[data_spec, data_spec]),
            compiler_params=cparams,
        )(inp2, thresh_rows)
    else:
        leak_rows = _param_rows(jax.nn.sigmoid(leak_proxy), B, C, rows, rows_p, dtype)
        v2 = _pad2(prev_v.reshape(rows, cols), rows_p, cols_p)
        z2 = _pad2(prev_z.reshape(rows, cols), rows_p, cols_p)
        new_v2, new_z2 = pl.pallas_call(
            _lif_step_kernel,
            out_shape=out_shape,
            grid_spec=pltpu.PrefetchScalarGridSpec(
                num_scalar_prefetch=0, grid=grid,
                in_specs=[data_spec, data_spec, data_spec, param_spec, param_spec],
                out_specs=[data_spec, data_spec]),
            compiler_params=cparams,
        )(inp2, v2, z2, leak_rows, thresh_rows)

    new_v = new_v2[:rows, :cols].reshape(B, C, H, W)
    new_z = new_z2[:rows, :cols].reshape(B, C, H, W)
    return new_v, new_z


# --------------------------------------------------------------------------
# time-fused recurrence kernels (v/z resident in VMEM across the time axis)
# --------------------------------------------------------------------------

def _lif_seq_compute(inp_ref, leak_ref, thresh_ref, z_seq_ref, v_final_ref,
                     v_s, z_s):
    new_v = v_s[...] * leak_ref[...] * (1.0 - z_s[...]) + inp_ref[0]
    new_z = jnp.where(new_v - thresh_ref[...] > 0.0, 1.0, 0.0).astype(v_s.dtype)
    v_s[...] = new_v
    z_s[...] = new_z
    z_seq_ref[...] = new_z[None, :, :].astype(z_seq_ref.dtype)
    # v_final block index is constant along t -> stays resident; last write wins.
    v_final_ref[...] = new_v.astype(v_final_ref.dtype)


def _lif_seq_kernel(inp_ref, leak_ref, thresh_ref, v0_ref, z0_ref,
                    z_seq_ref, v_final_ref, v_s, z_s):
    @pl.when(pl.program_id(2) == 0)
    def _():
        v_s[...] = v0_ref[...]
        z_s[...] = z0_ref[...]
    _lif_seq_compute(inp_ref, leak_ref, thresh_ref, z_seq_ref, v_final_ref, v_s, z_s)


def _lif_seq_zero_state_kernel(inp_ref, leak_ref, thresh_ref,
                               z_seq_ref, v_final_ref, v_s, z_s):
    @pl.when(pl.program_id(2) == 0)
    def _():
        v_s[...] = jnp.zeros_like(v_s)
        z_s[...] = jnp.zeros_like(z_s)
    _lif_seq_compute(inp_ref, leak_ref, thresh_ref, z_seq_ref, v_final_ref, v_s, z_s)


def lif_sequence_forward(inp_seq, leak_proxy, thresh, v0=None, z0=None,
                         z_dtype=None):
    """T fused LIF timesteps.  inp_seq is time-major: (T, B, C, H, W).

    Returns (z_seq [T,B,C,H,W], final_v [B,C,H,W], final_z [B,C,H,W]).
    In the full EfficientSpikeFlowNet the recurrence is per-layer only, so a
    whole layer's T steps can be processed this way before the next conv.
    """
    T, B, C, H, W = inp_seq.shape
    dtype = inp_seq.dtype
    z_dtype = dtype if z_dtype is None else jnp.dtype(z_dtype)
    rows, cols = B * C, H * W
    min_item = min(jnp.dtype(dtype).itemsize, jnp.dtype(z_dtype).itemsize)
    rows_p, cols_p, row_blk, col_blk = _tile_plan(rows, cols, min_itemsize=min_item)
    grid = (rows_p // row_blk, cols_p // col_blk, T)

    seq_spec = pl.BlockSpec((1, row_blk, col_blk), lambda i, j, t: (t, i, j))
    state_spec = pl.BlockSpec((row_blk, col_blk), lambda i, j, t: (i, j))
    param_spec = pl.BlockSpec((row_blk, 1), lambda i, j, t: (i, 0))

    leak_rows = _param_rows(jax.nn.sigmoid(leak_proxy), B, C, rows, rows_p, dtype)
    thresh_rows = _param_rows(jnp.maximum(thresh, 0.01), B, C, rows, rows_p, dtype)
    inp3 = _pad3(inp_seq.reshape(T, rows, cols), rows_p, cols_p)

    out_shape = (jax.ShapeDtypeStruct((T, rows_p, cols_p), z_dtype),
                 jax.ShapeDtypeStruct((rows_p, cols_p), dtype))
    scratch = [pltpu.VMEM((row_blk, col_blk), dtype),
               pltpu.VMEM((row_blk, col_blk), dtype)]
    cparams = pltpu.CompilerParams(
        dimension_semantics=("parallel", "parallel", "arbitrary"))

    if v0 is None or z0 is None:
        z_seq3, v_final2 = pl.pallas_call(
            _lif_seq_zero_state_kernel,
            out_shape=out_shape,
            grid_spec=pltpu.PrefetchScalarGridSpec(
                num_scalar_prefetch=0, grid=grid,
                in_specs=[seq_spec, param_spec, param_spec],
                out_specs=[seq_spec, state_spec],
                scratch_shapes=scratch),
            compiler_params=cparams,
        )(inp3, leak_rows, thresh_rows)
    else:
        v02 = _pad2(v0.reshape(rows, cols), rows_p, cols_p)
        z02 = _pad2(z0.reshape(rows, cols), rows_p, cols_p)
        z_seq3, v_final2 = pl.pallas_call(
            _lif_seq_kernel,
            out_shape=out_shape,
            grid_spec=pltpu.PrefetchScalarGridSpec(
                num_scalar_prefetch=0, grid=grid,
                in_specs=[seq_spec, param_spec, param_spec, state_spec, state_spec],
                out_specs=[seq_spec, state_spec],
                scratch_shapes=scratch),
            compiler_params=cparams,
        )(inp3, leak_rows, thresh_rows, v02, z02)

    z_seq = z_seq3[:, :rows, :cols].reshape(T, B, C, H, W)
    final_v = v_final2[:rows, :cols].reshape(B, C, H, W)
    final_z = z_seq[-1].astype(dtype)
    return z_seq, final_v, final_z


# --------------------------------------------------------------------------
# references
# --------------------------------------------------------------------------

def _reference_step(inp, leak_proxy, thresh, prev_v, prev_z):
    t = jnp.maximum(thresh, 0.01)
    leak = jax.nn.sigmoid(leak_proxy)
    new_v = prev_v * leak * (1.0 - prev_z) + inp
    new_z = jnp.where(new_v - t > 0.0, 1.0, 0.0).astype(inp.dtype)
    return new_v, new_z


def _reference_seq(inp_seq, leak_proxy, thresh, v0, z0):
    t = jnp.maximum(thresh, 0.01)
    leak = jax.nn.sigmoid(leak_proxy)

    def step(carry, x):
        v, z = carry
        new_v = v * leak * (1.0 - z) + x
        new_z = jnp.where(new_v - t > 0.0, 1.0, 0.0).astype(x.dtype)
        return (new_v, new_z), new_z

    (vf, zf), z_seq = jax.lax.scan(step, (v0, z0), inp_seq)
    return z_seq, vf, zf


# --------------------------------------------------------------------------
# demo / self-test
# --------------------------------------------------------------------------

if __name__ == "__main__":
    key = jax.random.PRNGKey(0)
    keys = jax.random.split(key, 10)

    # Shapes consistent with an EfficientSpikeFlowNet encoder stage.
    B, C, H, W, T = 2, 4, 16, 16, 8

    # LIF init: leak_proxy ~ N(0, 0) -> zeros; thresh ~ N(0, 1).
    leak_proxy = jnp.zeros((C, 1, 1), jnp.float32)
    thresh = jax.random.normal(keys[0], (C, 1, 1), jnp.float32)

    inp = jax.random.normal(keys[1], (B, C, H, W), jnp.float32)
    prev_v = jax.random.normal(keys[2], (B, C, H, W), jnp.float32)
    prev_z = (jax.random.uniform(keys[3], (B, C, H, W)) > 0.5).astype(jnp.float32)

    # 1) single timestep with carried state
    new_v, new_z = lif_forward(inp, leak_proxy, thresh, prev_v, prev_z)
    jax.block_until_ready((new_v, new_z))
    ref_v, ref_z = _reference_step(inp, leak_proxy, thresh, prev_v, prev_z)
    assert jnp.allclose(new_v, ref_v, atol=1e-6), "voltage mismatch (step)"
    assert jnp.array_equal(new_z, ref_z), "spike mismatch (step)"

    # 2) specialized zero-state path + bf16 spike output (0/1 is lossless in bf16)
    nv0, nz0 = lif_forward(inp, leak_proxy, thresh, z_dtype=jnp.bfloat16)
    jax.block_until_ready((nv0, nz0))
    rv0, rz0 = _reference_step(inp, leak_proxy, thresh,
                               jnp.zeros_like(inp), jnp.zeros_like(inp))
    assert jnp.allclose(nv0, rv0, atol=1e-6), "voltage mismatch (zero state)"
    assert jnp.array_equal(nz0.astype(jnp.float32), rz0), "spike mismatch (zero state)"

    # 3) non-(8,128)-aligned shape, exercising the pad/slice path
    B2, C2, H2, W2 = 2, 3, 9, 9
    lp2 = jax.random.normal(keys[4], (C2, 1, 1), jnp.float32) * 0.3
    th2 = jax.random.normal(keys[5], (C2, 1, 1), jnp.float32)
    inp_s = jax.random.normal(keys[6], (B2, C2, H2, W2), jnp.float32)
    pv_s = jax.random.normal(keys[7], (B2, C2, H2, W2), jnp.float32)
    pz_s = (jax.random.uniform(keys[8], (B2, C2, H2, W2)) > 0.5).astype(jnp.float32)
    nv_s, nz_s = lif_forward(inp_s, lp2, th2, pv_s, pz_s)
    jax.block_until_ready((nv_s, nz_s))
    rv_s, rz_s = _reference_step(inp_s, lp2, th2, pv_s, pz_s)
    assert jnp.allclose(nv_s, rv_s, atol=1e-6), "voltage mismatch (padded)"
    assert jnp.array_equal(nz_s, rz_s), "spike mismatch (padded)"

    # 4) time-fused recurrence, zero initial state (the common t=0 case)
    inp_seq = jax.random.normal(keys[9], (T, B, C, H, W), jnp.float32)
    z_seq, v_f, z_f = lif_sequence_forward(inp_seq, leak_proxy, thresh)
    jax.block_until_ready((z_seq, v_f, z_f))
    rzs, rvf, rzf = _reference_seq(inp_seq, leak_proxy, thresh,
                                   jnp.zeros((B, C, H, W), jnp.float32),
                                   jnp.zeros((B, C, H, W), jnp.float32))
    assert jnp.allclose(v_f, rvf, atol=1e-5), "final voltage mismatch (seq)"
    assert jnp.array_equal(z_seq, rzs), "spike-train mismatch (seq)"
    assert jnp.array_equal(z_f, rzf), "final spike mismatch (seq)"

    # 5) time-fused recurrence with a carried initial state
    z_seq2, v_f2, z_f2 = lif_sequence_forward(inp_seq, leak_proxy, thresh,
                                              prev_v, prev_z)
    jax.block_until_ready((z_seq2, v_f2, z_f2))
    rzs2, rvf2, rzf2 = _reference_seq(inp_seq, leak_proxy, thresh, prev_v, prev_z)
    assert jnp.allclose(v_f2, rvf2, atol=1e-5), "final voltage mismatch (seq/state)"
    assert jnp.array_equal(z_seq2, rzs2), "spike-train mismatch (seq/state)"

    # TODO(synk): arctan surrogate gradient (backward) not implemented; forward
    # heaviside matches the PyTorch module's forward semantics exactly.  The
    # surrounding Conv2d / ConvTranspose2d / BatchNorm / prediction heads of
    # EfficientSpikeFlowNet are left to XLA's MXU conv kernels; these Pallas
    # kernels fuse the LIF state recurrence.
    print("KERNEL_OK")
</pallas_src>

<mosaic_0001>
module attributes {stable_mosaic.version = 11 : i64} {
  func.func @_lif_step_kernel(%arg0: i32, %arg1: i32, %arg2: memref<8x256xf32, #tpu.memory_space<vmem>>, %arg3: memref<8x256xf32, #tpu.memory_space<vmem>>, %arg4: memref<8x256xf32, #tpu.memory_space<vmem>>, %arg5: memref<8x1xf32, #tpu.memory_space<vmem>>, %arg6: memref<8x1xf32, #tpu.memory_space<vmem>>, %arg7: memref<8x256xf32, #tpu.memory_space<vmem>>, %arg8: memref<8x256xf32, #tpu.memory_space<vmem>>) attributes {dimension_semantics = [#tpu.dimension_semantics<parallel>, #tpu.dimension_semantics<parallel>], iteration_bounds = array<i64: 1, 1>, scalar_prefetch = 0 : i64, scratch_operands = 0 : i64, tpu.core_type = #tpu.core_type<tc>, window_params = [{transform_indices = @transform_0, window_bounds = array<i64: 8, 256>}, {transform_indices = @transform_1, window_bounds = array<i64: 8, 256>}, {transform_indices = @transform_2, window_bounds = array<i64: 8, 256>}, {transform_indices = @transform_3, window_bounds = array<i64: 8, 1>}, {transform_indices = @transform_4, window_bounds = array<i64: 8, 1>}, {transform_indices = @transform_5, window_bounds = array<i64: 8, 256>}, {transform_indices = @transform_6, window_bounds = array<i64: 8, 256>}]} {
    %c0 = arith.constant 0 : index
    %c0_0 = arith.constant 0 : index
    %0 = vector.load %arg5[%c0, %c0_0] : memref<8x1xf32, #tpu.memory_space<vmem>>, vector<8x1xf32>
    %c0_1 = arith.constant 0 : index
    %c0_2 = arith.constant 0 : index
    %1 = vector.load %arg6[%c0_1, %c0_2] : memref<8x1xf32, #tpu.memory_space<vmem>>, vector<8x1xf32>
    %c0_3 = arith.constant 0 : index
    %c0_4 = arith.constant 0 : index
    %2 = vector.load %arg3[%c0_3, %c0_4] : memref<8x256xf32, #tpu.memory_space<vmem>>, vector<8x256xf32>
    %3 = vector.broadcast %0 : vector<8x1xf32> to vector<8x256xf32>
    %4 = arith.mulf %2, %3 : vector<8x256xf32>
    %c0_5 = arith.constant 0 : index
    %c0_6 = arith.constant 0 : index
    %5 = vector.load %arg4[%c0_5, %c0_6] : memref<8x256xf32, #tpu.memory_space<vmem>>, vector<8x256xf32>
    %cst = arith.constant 1.000000e+00 : f32
    %6 = vector.broadcast %cst : f32 to vector<8x256xf32>
    %7 = arith.subf %6, %5 : vector<8x256xf32>
    %8 = arith.mulf %4, %7 : vector<8x256xf32>
    %c0_7 = arith.constant 0 : index
    %c0_8 = arith.constant 0 : index
    %9 = vector.load %arg2[%c0_7, %c0_8] : memref<8x256xf32, #tpu.memory_space<vmem>>, vector<8x256xf32>
    %10 = arith.addf %8, %9 : vector<8x256xf32>
    %c0_9 = arith.constant 0 : index
    %c0_10 = arith.constant 0 : index
    %11 = vector.load %arg7[%c0_9, %c0_10] : memref<8x256xf32, #tpu.memory_space<vmem>>, vector<8x256xf32>
    tpu.vector_store %arg7[%c0_9, %c0_10], %10 {strides = array<i32>} : memref<8x256xf32, #tpu.memory_space<vmem>>, vector<8x256xf32>,
    %12 = vector.broadcast %1 : vector<8x1xf32> to vector<8x256xf32>
    %13 = arith.subf %10, %12 : vector<8x256xf32>
    %cst_11 = arith.constant 0.000000e+00 : f32
    %14 = vector.broadcast %cst_11 : f32 to vector<8x256xf32>
    %15 = arith.cmpf ogt, %13, %14 : vector<8x256xf32>
    %cst_12 = arith.constant 1.000000e+00 : f32
    %cst_13 = arith.constant 0.000000e+00 : f32
    %16 = vector.broadcast %cst_12 : f32 to vector<8x256xf32>
    %17 = vector.broadcast %cst_13 : f32 to vector<8x256xf32>
    %18 = arith.select %15, %16, %17 : vector<8x256xi1>, vector<8x256xf32>
    %c0_14 = arith.constant 0 : index
    %c0_15 = arith.constant 0 : index
    %19 = vector.load %arg8[%c0_14, %c0_15] : memref<8x256xf32, #tpu.memory_space<vmem>>, vector<8x256xf32>
    tpu.vector_store %arg8[%c0_14, %c0_15], %18 {strides = array<i32>} : memref<8x256xf32, #tpu.memory_space<vmem>>, vector<8x256xf32>,
    return
  }
  func.func @transform_0(%arg0: i32, %arg1: i32) -> (i32, i32) {
    %c0_i32 = arith.constant 0 : i32
    return %arg0, %arg1 : i32, i32
  }
  func.func @transform_1(%arg0: i32, %arg1: i32) -> (i32, i32) {
    %c0_i32 = arith.constant 0 : i32
    return %arg0, %arg1 : i32, i32
  }
  func.func @transform_2(%arg0: i32, %arg1: i32) -> (i32, i32) {
    %c0_i32 = arith.constant 0 : i32
    return %arg0, %arg1 : i32, i32
  }
  func.func @transform_3(%arg0: i32, %arg1: i32) -> (i32, i32) {
    %c0_i32 = arith.constant 0 : i32
    %c0_i32_0 = arith.constant 0 : i32
    return %arg0, %c0_i32 : i32, i32
  }
  func.func @transform_4(%arg0: i32, %arg1: i32) -> (i32, i32) {
    %c0_i32 = arith.constant 0 : i32
    %c0_i32_0 = arith.constant 0 : i32
    return %arg0, %c0_i32 : i32, i32
  }
  func.func @transform_5(%arg0: i32, %arg1: i32) -> (i32, i32) {
    %c0_i32 = arith.constant 0 : i32
    return %arg0, %arg1 : i32, i32
  }
  func.func @transform_6(%arg0: i32, %arg1: i32) -> (i32, i32) {
    %c0_i32 = arith.constant 0 : i32
    return %arg0, %arg1 : i32, i32
  }
}

</mosaic_0001>

<llo_original>
// kernel: tpu_custom_call.1
$region0: #{tpu_custom_call.1}
  #allocation0 [shape = 'u32[]', space=smem, size = 0x4, offset = 0x4, fixed_abs, tag = 'smem constant byte address 0x4 - core index']
  #allocation1 [shape = 'u32[144,128]{1,0:T(1,128)}', space=vmem, size = 0x12000, scoped, tag = 'internal scratch']
  %s0 = inlined_call_operand.vmem [shape: f32[8,256], index: 0, kind: input, shape index: {}]
  %s1 = inlined_call_operand.hbm [shape: f32[8,256], index: 1, kind: input, shape index: {}]
  %s2 = inlined_call_operand.hbm [shape: f32[8,256], index: 2, kind: input, shape index: {}]
  %s3 = inlined_call_operand.vmem [shape: f32[8,1], index: 3, kind: input, shape index: {}]
  %s4 = inlined_call_operand.vmem [shape: f32[8,1], index: 4, kind: input, shape index: {}]
  %s5 = inlined_call_operand.hbm [shape: f32[8,256], index: 5, kind: output, shape index: {0}]
  %s6 = inlined_call_operand.hbm [shape: f32[8,256], index: 6, kind: output, shape index: {1}]
  %7 = xla_tuple %s5, %s6
  %s8 = sld [smem:[#allocation0]]
  $region46: #{tpu_custom_call.1} parent=0
    _
  %s10 = ssub.s32 1, %s8
  %s11 = scalar_select 0, %s10, %s8
  $region1: #{tpu_custom_call.1} parent=0
    #allocation2 [shape = 'u8[8192]{0}', space=vmem, size = 0x2000, scoped, tag = 'input window, operand 1, single buffered']
    #allocation3 [shape = 's32[1]{0}', space=sflag, size = 0x4, scoped, tag = 'scoped memory for tpu_custom_call.1']
    #allocation4 [shape = 's32[1]{0}', space=sflag, size = 0x4, scoped, tag = 'scoped memory for tpu_custom_call.1']
    #allocation5 [shape = 'u8[8192]{0}', space=vmem, size = 0x2000, scoped, tag = 'input window, operand 2, single buffered']
    #allocation6 [shape = 's32[1]{0}', space=sflag, size = 0x4, scoped, tag = 'scoped memory for tpu_custom_call.1']
    #allocation7 [shape = 'u8[8192]{0}', space=vmem, size = 0x2000, scoped, tag = 'output window, operand 0, single buffered']
    #allocation8 [shape = 'u8[8192]{0}', space=vmem, size = 0x2000, scoped, tag = 'output window, operand 1, single buffered']
    #allocation9 [shape = 's32[1]{0}', space=sflag, size = 0x4, scoped, tag = 'scoped memory for tpu_custom_call.1']
    %12 = vsyncpa [#allocation3], 0
    %13 = vsyncpa [#allocation6], 0
    %14 = vsyncpa [#allocation4], 0
    %15 = vsyncpa [#allocation9], 0
    // Predicated region
    $region2: #{tpu_custom_call.1} parent=1 // pred_check
      _
    $region3: #{tpu_custom_call.1} parent=1 // pred_check_branch
      %17 = sbr.rel (0) target = $region5
    $region4: #{tpu_custom_call.1} parent=1 // pred_region
      _
    $region5: #{tpu_custom_call.1} parent=1 // pred_fallthru
      _
    // Predicated region
    $region6: #{tpu_custom_call.1} parent=1 // pred_check
      _
    $region7: #{tpu_custom_call.1} parent=1 // pred_check_branch
      %19 = sbr.rel (0) target = $region9
    $region8: #{tpu_custom_call.1} parent=1 // pred_region
      %s21 = ssub.s32 256, 256
      %22 = vsyncadd [#allocation3], %s21
      %s24 = sshll.u32 [#allocation2], 4
      %s25 = int_to_ptr.vmem [resolvable:$true] %s24
      %27 = dma.hbm_to_vmem [thread:$0]  %s1, 256, %s25, [#allocation3]
    $region9: #{tpu_custom_call.1} parent=1 // pred_fallthru
      _
    // Predicated region
    $region10: #{tpu_custom_call.1} parent=1 // pred_check
      _
    $region11: #{tpu_custom_call.1} parent=1 // pred_check_branch
      %29 = sbr.rel (0) target = $region13
    $region12: #{tpu_custom_call.1} parent=1 // pred_region
      %s31 = ssub.s32 256, 256
      %32 = vsyncadd [#allocation6], %s31
      %s34 = sshll.u32 [#allocation5], 4
      %s35 = int_to_ptr.vmem [resolvable:$true] %s34
      %37 = dma.hbm_to_vmem [thread:$0]  %s2, 256, %s35, [#allocation6]
    $region13: #{tpu_custom_call.1} parent=1 // pred_fallthru
      _
    // Predicated region
    $region14: #{tpu_custom_call.1} parent=1 // pred_check
      _
    $region15: #{tpu_custom_call.1} parent=1 // pred_check_branch
      %39 = sbr.rel (0) target = $region17
    $region16: #{tpu_custom_call.1} parent=1 // pred_region
      _
    $region17: #{tpu_custom_call.1} parent=1 // pred_fallthru
      _
    // Predicated region
    $region18: #{tpu_custom_call.1} parent=1 // pred_check
      _
    $region19: #{tpu_custom_call.1} parent=1 // pred_check_branch
      %41 = sbr.rel (0) target = $region21
    $region20: #{tpu_custom_call.1} parent=1 // pred_region
      _
    $region21: #{tpu_custom_call.1} parent=1 // pred_fallthru
      _
    // Predicated region
    $region22: #{tpu_custom_call.1} parent=1 // pred_check
      _
    $region23: #{tpu_custom_call.1} parent=1 // pred_check_branch
      %43 = sbr.rel (0) target = $region25
    $region24: #{tpu_custom_call.1} parent=1 // pred_region
      %44 = dma.done [#allocation3], 256
    $region25: #{tpu_custom_call.1} parent=1 // pred_fallthru
      _
    // Predicated region
    $region26: #{tpu_custom_call.1} parent=1 // pred_check
      _
    $region27: #{tpu_custom_call.1} parent=1 // pred_check_branch
      %46 = sbr.rel (0) target = $region29
    $region28: #{tpu_custom_call.1} parent=1 // pred_region
      %47 = dma.done [#allocation6], 256
    $region29: #{tpu_custom_call.1} parent=1 // pred_fallthru
      _
    %v48 = vld [vmem:[%s3] sm:$0xff]
    %v49 = vld [vmem:[%s4] sm:$0xff]
    %v50 = vld [vmem:[#allocation2] sm:$0xff]
    %v51 = vld [vmem:[#allocation2 + $0x8] sm:$0xff]
    %53 = vset.pattern.permute.xlu0 0
    %54 = vperm.xlu0 %53, %v48
    %v55 = vpop.permute.xlu0 %54
    %v57 = vmul.f32 %v50, %v55
    %v58 = vmul.f32 %v51, %v55
    %v59 = vld [vmem:[#allocation5] sm:$0xff]
    %v60 = vld [vmem:[#allocation5 + $0x8] sm:$0xff]
    %v61 = vsub.f32 1.0, %v59
    %v62 = vsub.f32 1.0, %v60
    %v63 = vmul.f32 %v57, %v61
    %v64 = vmul.f32 %v58, %v62
    %v65 = vld [vmem:[%s0] sm:$0xff]
    %v66 = vld [vmem:[%s0 + $0x8] sm:$0xff]
    %v67 = vadd.f32 %v63, %v65
    %v68 = vadd.f32 %v64, %v66
    %69 = vst [vmem:[#allocation7] sm:$0xff] %v67
    %70 = vst [vmem:[#allocation7 + $0x8] sm:$0xff] %v68
    %72 = vset.pattern.permute.xlu0 0
    %73 = vperm.xlu0 %72, %v49
    %v74 = vpop.permute.xlu0 %73
    %v76 = vsub.f32 %v67, %v74
    %v77 = vsub.f32 %v68, %v74
    %vm78 = vcmp.gt.f32.partialorder %v76, 0.0
    %vm79 = vcmp.gt.f32.partialorder %v77, 0.0
    %v80 = vsel %vm78, 1.0, 0.0
    %v81 = vsel %vm79, 1.0, 0.0
    %82 = vst [vmem:[#allocation8] sm:$0xff] %v80
    %83 = vst [vmem:[#allocation8 + $0x8] sm:$0xff] %v81
    // Predicated region
    $region30: #{tpu_custom_call.1} parent=1 // pred_check
      _
    $region31: #{tpu_custom_call.1} parent=1 // pred_check_branch
      %85 = sbr.rel (0) target = $region33
    $region32: #{tpu_custom_call.1} parent=1 // pred_region
      %s87 = ssub.s32 256, 256
      %88 = vsyncadd [#allocation4], %s87
      %s90 = sshll.u32 [#allocation7], 4
      %s91 = int_to_ptr.vmem [resolvable:$true] %s90
      %93 = dma.vmem_to_hbm [thread:$0]  %s91, 256, %s5, [#allocation4]
    $region33: #{tpu_custom_call.1} parent=1 // pred_fallthru
      _
    // Predicated region
    $region34: #{tpu_custom_call.1} parent=1 // pred_check
      _
    $region35: #{tpu_custom_call.1} parent=1 // pred_check_branch
      %95 = sbr.rel (0) target = $region37
    $region36: #{tpu_custom_call.1} parent=1 // pred_region
      %s97 = ssub.s32 256, 256
      %98 = vsyncadd [#allocation9], %s97
      %s100 = sshll.u32 [#allocation8], 4
      %s101 = int_to_ptr.vmem [resolvable:$true] %s100
      %103 = dma.vmem_to_hbm [thread:$0]  %s101, 256, %s6, [#allocation9]
    $region37: #{tpu_custom_call.1} parent=1 // pred_fallthru
      _
    // Predicated region
    $region38: #{tpu_custom_call.1} parent=1 // pred_check
      _
    $region39: #{tpu_custom_call.1} parent=1 // pred_check_branch
      %105 = sbr.rel (0) target = $region41
    $region40: #{tpu_custom_call.1} parent=1 // pred_region
      %106 = dma.done [#allocation4], 256
    $region41: #{tpu_custom_call.1} parent=1 // pred_fallthru
      _
    // Predicated region
    $region42: #{tpu_custom_call.1} parent=1 // pred_check
      _
    $region43: #{tpu_custom_call.1} parent=1 // pred_check_branch
      %108 = sbr.rel (0) target = $region45
    $region44: #{tpu_custom_call.1} parent=1 // pred_region
      %109 = dma.done [#allocation9], 256
    $region45: #{tpu_custom_call.1} parent=1 // pred_fallthru
      _
    %110 = vsyncpa [#allocation3], 1
    %111 = vsyncpa [#allocation6], 1
    %112 = vsyncpa [#allocation4], 1
    %113 = vsyncpa [#allocation9], 1

</llo_original>
